<compile_context>
chip_gen: v7x
topology: tpu7x:2x2x1
jax: 0.10.0
libtpu: 0.0.40
codegen_flags: <defaults>
</compile_context>

<pallas_src>
import math

import jax
import jax.numpy as jnp
import numpy as np
from jax.experimental import pallas as pl
from jax.experimental.pallas import tpu as pltpu

_LANES = 128


def _align(n, m):
    return ((n + m - 1) // m) * m


def _apply_activation(name, x):
    # TODO(synk): selu / multtanh / biased_tanh / softplustransformed not wired in (unused here).
    if name == "identity":
        return x
    if name == "relu":
        return jnp.maximum(x, 0.0)
    if name == "tanh":
        return jnp.tanh(x)
    if name == "sigmoid":
        return jax.nn.sigmoid(x)
    if name == "leaky_relu":
        return jnp.where(x > 0, x, 0.01 * x)
    if name == "softplus":
        return jax.nn.softplus(x)
    raise ValueError(f"activation '{name}' not supported in the Pallas kernel")


# ----------------------------------------------------------------------------- parameter packing
def _pack_layout(dims):
    """dims = [d_in, h1, ..., hk, d_out]; all row segments start at multiples of 8."""
    L = len(dims) - 1
    layout = {}
    r = 0
    for i in range(L - 1):                      # layers 0..L-2 stored transposed: (in_i, out_i)
        layout[("w", i)] = r
        r += _align(dims[i], 8)
    layout[("w", L - 1)] = r                    # last layer kept in torch layout: (out, in)
    r += _align(dims[L], 8)
    layout["b_rows"] = r                        # biases of layers 0..L-2, one row each
    r += _align(max(L - 1, 1), 8)
    layout["b_last"] = r                        # last-layer bias stored as a column (out, 1)
    r += _align(dims[L], 8)
    return layout, r


def pack_discriminator_params(weights, biases, dims):
    """weights[i]: (out_i, in_i) torch layout, biases[i]: (out_i,) -> single f32 (R, 128) block."""
    L = len(dims) - 1
    assert max(dims) <= _LANES, "layer widths > 128 would need a wider parameter pack"
    layout, rows = _pack_layout(dims)
    pack = jnp.zeros((rows, _LANES), jnp.float32)
    for i in range(L - 1):
        r0 = layout[("w", i)]
        pack = pack.at[r0:r0 + dims[i], 0:dims[i + 1]].set(
            jnp.asarray(weights[i], jnp.float32).T)
    r0 = layout[("w", L - 1)]
    pack = pack.at[r0:r0 + dims[L], 0:dims[L - 1]].set(jnp.asarray(weights[L - 1], jnp.float32))
    rb = layout["b_rows"]
    for i in range(L - 1):
        pack = pack.at[rb + i, 0:dims[i + 1]].set(jnp.asarray(biases[i], jnp.float32))
    rc = layout["b_last"]
    pack = pack.at[rc:rc + dims[L], 0].set(jnp.asarray(biases[L - 1], jnp.float32))
    return pack, layout


# ----------------------------------------------------------------------------- kernel
def _make_kernel(split_dims, dims, activations, layout):
    L = len(dims) - 1
    n_in = len(split_dims)

    def kernel(*refs):
        in_refs = refs[:n_in]
        p_ref = refs[n_in]
        out_ref = refs[n_in + 1]

        # layer 0: the torch concat is folded into per-input partial matmuls
        h1 = dims[1]
        r0 = layout[("w", 0)]
        acc = None
        col = 0
        for x_ref, d in zip(in_refs, split_dims):
            x = x_ref[...].astype(jnp.float32)                       # z = inputs.float()
            w = p_ref[r0 + col:r0 + col + d, 0:h1]
            part = jnp.dot(x, w, preferred_element_type=jnp.float32)
            acc = part if acc is None else acc + part
            col += d
        b0 = p_ref[layout["b_rows"]:layout["b_rows"] + 1, 0:h1]
        h = _apply_activation(activations[0], acc + b0)

        # hidden layers 1..L-2
        for i in range(1, L - 1):
            din, dout = dims[i], dims[i + 1]
            rw = layout[("w", i)]
            w = p_ref[rw:rw + din, 0:dout]
            b = p_ref[layout["b_rows"] + i:layout["b_rows"] + i + 1, 0:dout]
            h = _apply_activation(
                activations[i], jnp.dot(h, w, preferred_element_type=jnp.float32) + b)

        # last layer, computed lane-dense: (out_dim, block_rows) so stores are wide/unmasked
        dout, din = dims[L], dims[L - 1]
        rw = layout[("w", L - 1)]
        w_last = p_ref[rw:rw + dout, 0:din]                          # (out, in), torch layout
        b_last = p_ref[layout["b_last"]:layout["b_last"] + dout, 0:1]   # (out, 1)
        y = jnp.einsum("oh,bh->ob", w_last, h,
                       preferred_element_type=jnp.float32) + b_last
        out_ref[0] = _apply_activation(activations[L - 1], y)

    return kernel


# ----------------------------------------------------------------------------- wrapper
def discriminator_forward(inputs, weights, biases, activations, *, block_rows=4096):
    """inputs: tuple of (B, d_i) arrays, e.g. (states, actions). Returns (B, out_dim) f32."""
    inputs = tuple(inputs)
    B = inputs[0].shape[0]
    split_dims = tuple(int(x.shape[1]) for x in inputs)
    d_in = sum(split_dims)
    n_features = [int(w.shape[0]) for w in weights[:-1]]
    d_out = int(weights[-1].shape[0])
    dims = [d_in] + n_features + [d_out]
    L = len(dims) - 1
    assert len(weights) == len(biases) == len(activations) == L
    assert L >= 2  # TODO(synk): single-linear-layer nets not handled by this kernel structure
    for i in range(L):
        assert tuple(weights[i].shape) == (dims[i + 1], dims[i])

    pack, layout = pack_discriminator_params(weights, biases, dims)

    # batch tile: multiple of 8 sublanes, capped (256 KiB-ish state block at d_in~16, f32)
    tb = _align(min(int(block_rows), _align(B, 8)), 8)
    grid = pl.cdiv(B, tb)
    padded_b = grid * tb
    if padded_b != B:  # tail handling: pad in the wrapper, slice the result back
        inputs = tuple(jnp.pad(x, ((0, padded_b - B), (0, 0))) for x in inputs)

    kernel = _make_kernel(split_dims, dims, activations, layout)

    in_specs = [pl.BlockSpec((tb, d), lambda i: (i, 0)) for d in split_dims]
    in_specs.append(pl.BlockSpec(pack.shape, lambda i: (0, 0)))      # params resident in VMEM
    out_specs = pl.BlockSpec((1, d_out, tb), lambda i: (i, 0, 0))    # lane-dense output block

    out = pl.pallas_call(
        kernel,
        out_shape=jax.ShapeDtypeStruct((grid, d_out, tb), jnp.float32),
        grid=(grid,),
        in_specs=in_specs,
        out_specs=out_specs,
        compiler_params=pltpu.CompilerParams(
            dimension_semantics=("parallel",)),                      # megacore-shard batch (v7x)
    )(*inputs, pack)

    # (grid, d_out, tb) -> (B, d_out)
    return out.transpose(0, 2, 1).reshape(padded_b, d_out)[:B]


# ----------------------------------------------------------------------------- reference & demo
def reference_forward(inputs, weights, biases, activations):
    x = jnp.concatenate(inputs, axis=1).astype(jnp.float32)
    for w, b, act in zip(weights, biases, activations):
        x = _apply_activation(act, x @ w.T + b)
    return x


def _init_torch_linear(key, fan_out, fan_in, gain=1.0):
    key, kw, kb = jax.random.split(key, 3)
    limit = gain * math.sqrt(6.0 / (fan_in + fan_out))
    w = jax.random.uniform(kw, (fan_out, fan_in), jnp.float32, -limit, limit)
    bl = 1.0 / math.sqrt(fan_in)
    b = jax.random.uniform(kb, (fan_out,), jnp.float32, -bl, bl)
    return key, w, b


if __name__ == "__main__":
    # DiscriminatorNetwork(input_shape=(20,), output_shape=(1,), n_features=[32, 32],
    #                      activations=['relu', 'relu', 'identity'], use_actions=True)
    B, D_STATE, D_ACTION = 52, 16, 4
    n_features = [32, 32]
    activations = ["relu", "relu", "identity"]
    dims = [D_STATE + D_ACTION] + n_features + [1]

    key = jax.random.PRNGKey(0)
    weights, biases = [], []
    for i in range(len(dims) - 1):
        gain = math.sqrt(2.0) if activations[i] == "relu" else 1.0
        key, w, b = _init_torch_linear(key, dims[i + 1], dims[i], gain)
        weights.append(w)
        biases.append(b)

    key, ks, ka = jax.random.split(key, 3)
    states = jax.random.normal(ks, (B, D_STATE), jnp.float32)
    actions = jax.random.normal(ka, (B, D_ACTION), jnp.float32)

    # small block_rows so the demo exercises a multi-block grid plus a padded tail block
    logits = discriminator_forward((states, actions), weights, biases, activations,
                                   block_rows=16)
    logits = jax.block_until_ready(logits)

    ref = reference_forward((states, actions), weights, biases, activations)
    np.testing.assert_allclose(np.asarray(logits), np.asarray(ref), rtol=1e-4, atol=1e-5)
    assert logits.shape == (B, 1)

    print("KERNEL_OK")
</pallas_src>

<mosaic_0001>
module attributes {stable_mosaic.version = 11 : i64} {
  func.func @kernel(%arg0: i32, %arg1: memref<16x16xf32, #tpu.memory_space<vmem>>, %arg2: memref<16x4xf32, #tpu.memory_space<vmem>>, %arg3: memref<80x128xf32, #tpu.memory_space<vmem>>, %arg4: memref<1x1x16xf32, #tpu.memory_space<vmem>>) attributes {dimension_semantics = [#tpu.dimension_semantics<parallel>], iteration_bounds = array<i64: 4>, scalar_prefetch = 0 : i64, scratch_operands = 0 : i64, tpu.core_type = #tpu.core_type<tc>, window_params = [{transform_indices = @transform_0, window_bounds = array<i64: 16, 16>}, {transform_indices = @transform_1, window_bounds = array<i64: 16, 4>}, {pipeline_mode = #tpu.pipeline_mode<synchronous>, transform_indices = @transform_2, window_bounds = array<i64: 80, 128>}, {transform_indices = @transform_3, window_bounds = array<i64: 1, 1, 16>}]} {
    %c0 = arith.constant 0 : index
    %c0_0 = arith.constant 0 : index
    %0 = vector.load %arg1[%c0, %c0_0] : memref<16x16xf32, #tpu.memory_space<vmem>>, vector<16x16xf32>
    %c0_1 = arith.constant 0 : index
    %c0_2 = arith.constant 0 : index
    %1 = vector.load %arg3[%c0_1, %c0_2] : memref<80x128xf32, #tpu.memory_space<vmem>>, vector<16x32xf32>
    %cst = arith.constant dense<0.000000e+00> : vector<16x32xf32>
    %2 = tpu.matmul %0, %1, %cst {dimension_numbers = #tpu.dot_dimension_numbers<[1], [0], [0], [1], [0, 0, 1, 1], [], []>} : vector<16x16xf32>, vector<16x32xf32>, vector<16x32xf32> -> vector<16x32xf32>
    %c0_3 = arith.constant 0 : index
    %c0_4 = arith.constant 0 : index
    %3 = vector.load %arg2[%c0_3, %c0_4] : memref<16x4xf32, #tpu.memory_space<vmem>>, vector<16x4xf32>
    %c16 = arith.constant 16 : index
    %c0_5 = arith.constant 0 : index
    %4 = vector.load %arg3[%c16, %c0_5] : memref<80x128xf32, #tpu.memory_space<vmem>>, vector<4x32xf32>
    %cst_6 = arith.constant dense<0.000000e+00> : vector<16x32xf32>
    %5 = tpu.matmul %3, %4, %cst_6 {dimension_numbers = #tpu.dot_dimension_numbers<[1], [0], [0], [1], [0, 0, 1, 1], [], []>} : vector<16x4xf32>, vector<4x32xf32>, vector<16x32xf32> -> vector<16x32xf32>
    %6 = arith.addf %2, %5 : vector<16x32xf32>
    %c64 = arith.constant 64 : index
    %c0_7 = arith.constant 0 : index
    %7 = vector.load %arg3[%c64, %c0_7] : memref<80x128xf32, #tpu.memory_space<vmem>>, vector<1x32xf32>
    %8 = vector.broadcast %7 : vector<1x32xf32> to vector<16x32xf32>
    %9 = arith.addf %6, %8 : vector<16x32xf32>
    %cst_8 = arith.constant 0.000000e+00 : f32
    %10 = vector.broadcast %cst_8 : f32 to vector<16x32xf32>
    %11 = arith.maximumf %9, %10 : vector<16x32xf32>
    %c24 = arith.constant 24 : index
    %c0_9 = arith.constant 0 : index
    %12 = vector.load %arg3[%c24, %c0_9] : memref<80x128xf32, #tpu.memory_space<vmem>>, vector<32x32xf32>
    %c65 = arith.constant 65 : index
    %c0_10 = arith.constant 0 : index
    %13 = vector.load %arg3[%c65, %c0_10] : memref<80x128xf32, #tpu.memory_space<vmem>>, vector<1x32xf32>
    %cst_11 = arith.constant dense<0.000000e+00> : vector<16x32xf32>
    %14 = tpu.matmul %11, %12, %cst_11 {dimension_numbers = #tpu.dot_dimension_numbers<[1], [0], [0], [1], [0, 0, 1, 1], [], []>} : vector<16x32xf32>, vector<32x32xf32>, vector<16x32xf32> -> vector<16x32xf32>
    %15 = vector.broadcast %13 : vector<1x32xf32> to vector<16x32xf32>
    %16 = arith.addf %14, %15 : vector<16x32xf32>
    %cst_12 = arith.constant 0.000000e+00 : f32
    %17 = vector.broadcast %cst_12 : f32 to vector<16x32xf32>
    %18 = arith.maximumf %16, %17 : vector<16x32xf32>
    %c56 = arith.constant 56 : index
    %c0_13 = arith.constant 0 : index
    %19 = vector.load %arg3[%c56, %c0_13] : memref<80x128xf32, #tpu.memory_space<vmem>>, vector<1x32xf32>
    %c72 = arith.constant 72 : index
    %c0_14 = arith.constant 0 : index
    %20 = vector.load %arg3[%c72, %c0_14] : memref<80x128xf32, #tpu.memory_space<vmem>>, vector<1x1xf32>
    "tpu.trace_start"() <{level = 10 : i32, message = "oh,bh->ob"}> : () -> ()
    %cst_15 = arith.constant dense<0.000000e+00> : vector<1x16xf32>
    %21 = tpu.matmul %19, %18, %cst_15 {dimension_numbers = #tpu.dot_dimension_numbers<[1], [1], [0], [0], [0, 0, 1, 0], [], []>} : vector<1x32xf32>, vector<16x32xf32>, vector<1x16xf32> -> vector<1x16xf32>
    "tpu.trace_stop"() : () -> ()
    %22 = vector.broadcast %20 : vector<1x1xf32> to vector<1x16xf32>
    %23 = arith.addf %21, %22 : vector<1x16xf32>
    %c0_16 = arith.constant 0 : index
    %c0_17 = arith.constant 0 : index
    %c0_18 = arith.constant 0 : index
    %24 = vector.load %arg4[%c0_16, %c0_17, %c0_18] : memref<1x1x16xf32, #tpu.memory_space<vmem>>, vector<1x1x16xf32>
    %25 = vector.shape_cast %24 : vector<1x1x16xf32> to vector<1x16xf32>
    %26 = vector.shape_cast %23 : vector<1x16xf32> to vector<1x1x16xf32>
    tpu.vector_store %arg4[%c0_16, %c0_17, %c0_18], %26 {strides = array<i32>} : memref<1x1x16xf32, #tpu.memory_space<vmem>>, vector<1x1x16xf32>,
    return
  }
  func.func @transform_0(%arg0: i32) -> (i32, i32) {
    %c0_i32 = arith.constant 0 : i32
    %c0_i32_0 = arith.constant 0 : i32
    return %arg0, %c0_i32 : i32, i32
  }
  func.func @transform_1(%arg0: i32) -> (i32, i32) {
    %c0_i32 = arith.constant 0 : i32
    %c0_i32_0 = arith.constant 0 : i32
    return %arg0, %c0_i32 : i32, i32
  }
  func.func @transform_2(%arg0: i32) -> (i32, i32) {
    %c0_i32 = arith.constant 0 : i32
    %c0_i32_0 = arith.constant 0 : i32
    %c0_i32_1 = arith.constant 0 : i32
    return %c0_i32, %c0_i32_0 : i32, i32
  }
  func.func @transform_3(%arg0: i32) -> (i32, i32, i32) {
    %c0_i32 = arith.constant 0 : i32
    %c0_i32_0 = arith.constant 0 : i32
    %c0_i32_1 = arith.constant 0 : i32
    return %arg0, %c0_i32, %c0_i32_0 : i32, i32, i32
  }
}

</mosaic_0001>

<llo_original>
// kernel: tpu_custom_call.1
$region0: #{tpu_custom_call.1}
  #allocation0 [shape = 'u32[]', space=smem, size = 0x4, offset = 0x4, fixed_abs, tag = 'smem constant byte address 0x4 - core index']
  #allocation1 [shape = 'u32[144,128]{1,0:T(1,128)}', space=vmem, size = 0x12000, scoped, tag = 'internal scratch']
  %s0 = inlined_call_operand.vmem [shape: f32[64,16], index: 0, kind: input, shape index: {}]
  %s1 = inlined_call_operand.vmem [shape: f32[64,4], index: 1, kind: input, shape index: {}]
  %s2 = inlined_call_operand.vmem [shape: f32[80,128], index: 2, kind: input, shape index: {}]
  %s3 = inlined_call_operand.hbm [shape: f32[4,1,16], index: 3, kind: output, shape index: {}]
  %s4 = sld [smem:[#allocation0]]
  $region45: #{tpu_custom_call.1} parent=0
    _
  %s6 = ssub.s32 1, %s4
  %s7 = scalar_select 0, %s6, %s4
  $region1: #{tpu_custom_call.1} parent=0
    #allocation2 [shape = 'u8[1024]{0}', space=vmem, size = 0x400, scoped, tag = 'output window, operand 0']
    #allocation3 [shape = 's32[2]{0}', space=sflag, size = 0x8, scoped, tag = 'scoped memory for tpu_custom_call.1']
    %8 = vsyncpa [#allocation3], 0
    %s9 = scalar_lea.sflag [#allocation3], 1
    %10 = vsyncpa %s9, 0
    loop: start=0, step=1, limit=6
    $region2: #{tpu_custom_call.1} parent=1 // loop_pre_header
      _
    $region3: #{tpu_custom_call.1} parent=1 // loop_header
      %s12 = sphi 0, %s16
      %p13 = scmp.ge.s32.totalorder %s12, 6
      %s22 = sphi 0, %s24
      %s25 = sphi 0, %s22
      %s26 = sphi 0, %s25
      %s42 = sphi 0, %s26
      %s48 = sphi 0, %s50
      %s51 = sphi 0, %s48
      %s52 = sphi 0, %s51
      %s68 = sphi 0, %s52
      %s72 = sphi 0, %s72
      %s74 = sphi 0, %s72
      %s75 = sphi 0, %s74
      %s89 = sphi 0, %s75
      %s95 = sphi 0, %s97
      %s98 = sphi 0, %s95
      %s99 = sphi 0, %s98
      %s115 = sphi 0, %s99
    $region4: #{tpu_custom_call.1} parent=1 // loop_header_branch
      %15 = sbr.rel (%p13) target = $region8
    $region5: #{tpu_custom_call.1} parent=1 // loop_body
      %s17 = ssub.s32 %s12, 1
      %s18 = ssub.s32 %s12, 2
      %s19 = sadd.s32 %s12, 1
      %s20 = ssub.s32 %s12, %s19
      %p21 = scmp.eq.s32.totalorder %s20, 0
      %s23 = sadd.s32 %s22, 1
      %s24 = scalar_select %p21, %s22, %s23
      %p27 = pneg %p21
      %p28 = scmp.eq.s32.totalorder %s12, 3
      %p29 = por %p27, %p28
      %p30 = scmp.ne.s32.totalorder %s22, %s25
      %p31 = scmp.eq.s32.totalorder %s12, 0
      %p32 = por %p30, %p31
      %p33 = scmp.ne.s32.totalorder %s22, %s25
      %p34 = scmp.eq.s32.totalorder %s17, 3
      %p35 = por %p33, %p34
      %p36 = scmp.ne.s32.totalorder %s25, %s26
      %p37 = scmp.eq.s32.totalorder %s17, 0
      %p38 = por %p36, %p37
      %p39 = scmp.ne.s32.totalorder %s25, %s26
      %p40 = scmp.eq.s32.totalorder %s18, 3
      %p41 = por %p39, %p40
      %p43 = scmp.ne.s32.totalorder %s26, %s42
      %p44 = scmp.eq.s32.totalorder %s18, 0
      %p45 = por %p43, %p44
      %s46 = ssub.s32 %s12, %s19
      %p47 = scmp.eq.s32.totalorder %s46, 0
      %s49 = sadd.s32 %s48, 1
      %s50 = scalar_select %p47, %s48, %s49
      %p53 = pneg %p47
      %p54 = scmp.eq.s32.totalorder %s12, 3
      %p55 = por %p53, %p54
      %p56 = scmp.ne.s32.totalorder %s48, %s51
      %p57 = scmp.eq.s32.totalorder %s12, 0
      %p58 = por %p56, %p57
      %p59 = scmp.ne.s32.totalorder %s48, %s51
      %p60 = scmp.eq.s32.totalorder %s17, 3
      %p61 = por %p59, %p60
      %p62 = scmp.ne.s32.totalorder %s51, %s52
      %p63 = scmp.eq.s32.totalorder %s17, 0
      %p64 = por %p62, %p63
      %p65 = scmp.ne.s32.totalorder %s51, %s52
      %p66 = scmp.eq.s32.totalorder %s18, 3
      %p67 = por %p65, %p66
      %p69 = scmp.ne.s32.totalorder %s52, %s68
      %p70 = scmp.eq.s32.totalorder %s18, 0
      %p71 = por %p69, %p70
      %s73 = sadd.s32 %s72, 1
      %p76 = scmp.eq.s32.totalorder %s12, 3
      %p77 = scmp.ne.s32.totalorder %s72, %s74
      %p78 = scmp.eq.s32.totalorder %s12, 0
      %p79 = por %p77, %p78
      %p80 = scmp.ne.s32.totalorder %s72, %s74
      %p81 = scmp.eq.s32.totalorder %s17, 3
      %p82 = por %p80, %p81
      %p83 = scmp.ne.s32.totalorder %s74, %s75
      %p84 = scmp.eq.s32.totalorder %s17, 0
      %p85 = por %p83, %p84
      %p86 = scmp.ne.s32.totalorder %s74, %s75
      %p87 = scmp.eq.s32.totalorder %s18, 3
      %p88 = por %p86, %p87
      %p90 = scmp.ne.s32.totalorder %s75, %s89
      %p91 = scmp.eq.s32.totalorder %s18, 0
      %p92 = por %p90, %p91
      %s93 = ssub.s32 %s12, %s19
      %p94 = scmp.eq.s32.totalorder %s93, 0
      %s96 = sadd.s32 %s95, 1
      %s97 = scalar_select %p94, %s95, %s96
      %p100 = pneg %p94
      %p101 = scmp.eq.s32.totalorder %s12, 3
      %p102 = por %p100, %p101
      %p103 = scmp.ne.s32.totalorder %s95, %s98
      %p104 = scmp.eq.s32.totalorder %s12, 0
      %p105 = por %p103, %p104
      %p106 = scmp.ne.s32.totalorder %s95, %s98
      %p107 = scmp.eq.s32.totalorder %s17, 3
      %p108 = por %p106, %p107
      %p109 = scmp.ne.s32.totalorder %s98, %s99
      %p110 = scmp.eq.s32.totalorder %s17, 0
      %p111 = por %p109, %p110
      %p112 = scmp.ne.s32.totalorder %s98, %s99
      %p113 = scmp.eq.s32.totalorder %s18, 3
      %p114 = por %p112, %p113
      %p116 = scmp.ne.s32.totalorder %s99, %s115
      %p117 = scmp.eq.s32.totalorder %s18, 0
      %p118 = por %p116, %p117
      %p119 = scmp.le.s32.totalorder 1, %s12
      %p120 = scmp.lt.s32.totalorder %s12, 5
      %p121 = pnand %p119, %p120
      %p122 = pneg %p121
      // Predicated region
      $region9: #{tpu_custom_call.1} parent=5 // pred_check
        _
      $region10: #{tpu_custom_call.1} parent=5 // pred_check_branch
        %124 = sbr.rel (%p121) target = $region12
      $region11: #{tpu_custom_call.1} parent=5 // pred_region
        %s125 = ssub.s32 %s12, 1
        // Predicated region
        $region13: #{tpu_custom_call.1} parent=11 // pred_check
          %p126 = pneg %p85
        $region14: #{tpu_custom_call.1} parent=11 // pred_check_branch
          %128 = sbr.rel (%p126) target = $region16
        $region15: #{tpu_custom_call.1} parent=11 // pred_region
          _
        $region16: #{tpu_custom_call.1} parent=11 // pred_fallthru
          _
      $region12: #{tpu_custom_call.1} parent=5 // pred_fallthru
        _
      %p129 = scmp.lt.s32.totalorder %s12, 4
      // Predicated region
      $region17: #{tpu_custom_call.1} parent=5 // pred_check
        %p130 = pneg %p129
      $region18: #{tpu_custom_call.1} parent=5 // pred_check_branch
        %132 = sbr.rel (%p130) target = $region20
      $region19: #{tpu_custom_call.1} parent=5 // pred_region
        // Predicated region
        $region21: #{tpu_custom_call.1} parent=19 // pred_check
          %p133 = pneg %p32
        $region22: #{tpu_custom_call.1} parent=19 // pred_check_branch
          %135 = sbr.rel (%p133) target = $region24
        $region23: #{tpu_custom_call.1} parent=19 // pred_region
          %s136 = smul.u32 2, %s12
          %p137 = scmp.lt.s32.totalorder %s136, 7
          %s138 = scalar_select %p137, %s136, 7
          %s139 = smul.addr %s138, 8
          %s140 = scalar_lea.vmem %s0, %s139
          %s141 = smul.u32 2, %s12
        $region24: #{tpu_custom_call.1} parent=19 // pred_fallthru
          _
        // Predicated region
        $region25: #{tpu_custom_call.1} parent=19 // pred_check
          %p142 = pneg %p58
        $region26: #{tpu_custom_call.1} parent=19 // pred_check_branch
          %144 = sbr.rel (%p142) target = $region28
        $region27: #{tpu_custom_call.1} parent=19 // pred_region
          %s145 = smul.u32 2, %s12
          %p146 = scmp.lt.s32.totalorder %s145, 7
          %s147 = scalar_select %p146, %s145, 7
          %s148 = smul.addr %s147, 8
          %s149 = scalar_lea.vmem %s1, %s148
          %s150 = smul.u32 2, %s12
        $region28: #{tpu_custom_call.1} parent=19 // pred_fallthru
          _
      $region20: #{tpu_custom_call.1} parent=5 // pred_fallthru
        _
      %p151 = scmp.le.s32.totalorder 1, %s12
      %p152 = scmp.lt.s32.totalorder %s12, 5
      %p153 = pnand %p151, %p152
      %p154 = pneg %p153
      // Predicated region
      $region29: #{tpu_custom_call.1} parent=5 // pred_check
        _
      $region30: #{tpu_custom_call.1} parent=5 // pred_check_branch
        %156 = sbr.rel (%p153) target = $region32
      $region31: #{tpu_custom_call.1} parent=5 // pred_region
        %s157 = ssub.s32 %s12, 1
        %s158 = smul.u32 2, %s17
        %p159 = scmp.lt.s32.totalorder %s158, 7
        %s160 = scalar_select %p159, %s158, 7
        %s161 = smul.addr %s160, 8
        %s162 = scalar_lea.vmem %s0, %s161
        %p163 = pneg %p38
        %p164 = pneg %p35
        %s165 = smul.u32 2, %s17
        %p166 = scmp.lt.s32.totalorder %s165, 7
        %s167 = scalar_select %p166, %s165, 7
        %s168 = smul.addr %s167, 8
        %s169 = scalar_lea.vmem %s1, %s168
        %p170 = pneg %p64
        %p171 = pneg %p61
        %p172 = pneg %p85
        %p173 = pneg %p82
        %p174 = pneg %p111
        %p175 = pneg %p108
        %s176 = sand.u32 %s98, 1
        %s177 = scalar_lea.sflag [#allocation3], %s176
        %s178 = sand.u32 %s98, 1
        %s179 = scalar_lea.vmem [#allocation2], %s178
        %s180 = smul.u32 2, %s17
        %p181 = scmp.lt.s32.totalorder %s180, 7
        %s182 = scalar_select %p181, %s180, 7
        %s183 = smul.addr %s182, 8
        %s184 = scalar_lea.vmem %s0, %s183
        %s185 = smul.u32 2, %s17
        %s186 = smul.u32 2, %s17
        %p187 = scmp.lt.s32.totalorder %s186, 7
        %s188 = scalar_select %p187, %s186, 7
        %s189 = smul.addr %s188, 8
        %s190 = scalar_lea.vmem %s1, %s189
        %s191 = smul.u32 2, %s17
        %v192 = vld [vmem:[%s184] sm:$0xff]
        %v193 = vld [vmem:[%s184 + $0x8] sm:$0xff]
        %v194 = vld [vmem:[%s2] sm:$0xff]
        %v195 = vld [vmem:[%s2 + $0x8] sm:$0xff]
        %v196 = vld [vmem:[%s190] sm:$0xff]
        %v197 = vld [vmem:[%s190 + $0x8] sm:$0xff]
        %v198 = vld [vmem:[%s2 + $0x10] sm:$0xf]
        %vm199 = vcmask 31744
        %v201 = vsel %vm199, %v196, 0
        %v204 = vsel %vm199, %v197, 0
        %vm206 = vcmask 1043456
        %v208 = vsel %vm206, %v198, 0
        %210 = vmatprep.subr.mxu0 0.0
        %211 = vmatpush1.msra.mxu0 %v208
        %212 = vmatprep.subr.mxu0 0.0
        %213 = vmatpush1.msra.mxu0 0.0
        %214 = vmatprep.subr.mxu0 0.0
        %215 = vmatpush1.msra.mxu0 0.0
        %216 = vmatprep.subr.mxu0 0.0
        %217 = vmatpush1.msra.mxu0 0.0
        %218 = vmatprep.subr.mxu0 0.0
        %219 = vmatpush1.msra.mxu0 0.0
        %220 = vmatprep.subr.mxu0 0.0
        %221 = vmatpush1.msra.mxu0 0.0
        %222 = vmatprep.subr.mxu0 0.0
        %223 = vmatpush1.msra.mxu0 0.0
        %224 = vmatprep.subr.mxu0 0.0
        %225 = vmatpush1.msra.mxu0 0.0
        %226 = vmatprep.subr.mxu0 0.0
        %227 = vmatpush1.msra.mxu0 0.0
        %228 = vmatprep.subr.mxu0 0.0
        %229 = vmatpush1.msra.mxu0 0.0
        %230 = vmatprep.subr.mxu0 0.0
        %231 = vmatpush1.msra.mxu0 0.0
        %232 = vmatprep.subr.mxu0 0.0
        %233 = vmatpush1.msra.mxu0 0.0
        %234 = vmatprep.subr.mxu0 0.0
        %235 = vmatpush1.msra.mxu0 0.0
        %236 = vmatprep.subr.mxu0 0.0
        %237 = vmatpush1.msra.mxu0 0.0
        %238 = vmatprep.subr.mxu0 0.0
        %239 = vmatpush1.msra.mxu0 0.0
        %240 = vmatprep.subr.mxu0 0.0
        %241 = vmatpush1.msra.mxu0 0.0
        %242 = vmatprep.subr.mxu0 0.0
        %243 = vmatpush1.msra.mxu0 0.0
        %244 = vmatprep.subr.mxu0 0.0
        %245 = vmatpush1.msra.mxu0 0.0
        %246 = vmatprep.subr.mxu0 0.0
        %247 = vmatpush1.msra.mxu0 0.0
        %248 = vmatprep.subr.mxu0 0.0
        %249 = vmatpush1.msra.mxu0 0.0
        %250 = vmatprep.subr.mxu0 0.0
        %251 = vmatpush1.msra.mxu0 0.0
        %252 = vmatprep.subr.mxu0 0.0
        %253 = vmatpush1.msra.mxu0 0.0
        %254 = vmatprep.subr.mxu0 0.0
        %255 = vmatpush1.msra.mxu0 0.0
        %256 = vmatprep.subr.mxu0 0.0
        %257 = vmatpush1.msra.mxu0 0.0
        %258 = vmatprep.subr.mxu0 0.0
        %259 = vmatpush1.msra.mxu0 0.0
        %260 = vmatprep.subr.mxu0 0.0
        %261 = vmatpush1.msra.mxu0 0.0
        %262 = vmatprep.subr.mxu0 0.0
        %263 = vmatpush1.msra.mxu0 0.0
        %264 = vmatprep.subr.mxu0 0.0
        %265 = vmatpush1.msra.mxu0 0.0
        %266 = vmatprep.subr.mxu0 0.0
        %267 = vmatpush1.msra.mxu0 0.0
        %268 = vmatprep.subr.mxu0 0.0
        %269 = vmatpush1.msra.mxu0 0.0
        %270 = vmatprep.subr.mxu0 0.0
        %271 = vmatpush1.msra.mxu0 0.0
        %272 = vmatprep.subr.mxu0 0.0
        %273 = vmatpush1.msra.mxu0 0.0
        %274 = vmatprep.mubr.f32.mxu0 0.0
        %275 = vmatmul.mubr.f32.gmra.mrb[0].mxu0 %v201
        %v276 = vpop.f32.mrb[0].mxu0
        %v277 = vadd.f32 0.0, %v276
        %v278 = vpop.f32.mrb[0].mxu0
        %279 = vmatprep.mubr.f32.mxu0 0.0
        %280 = vmatmul.mubr.f32.gmra.mrb[0].mxu0 %v204
        %v281 = vpop.f32.mrb[0].mxu0
        %v282 = vadd.f32 0.0, %v281
        %v283 = vpop.f32.mrb[0].mxu0
        %284 = vdwg.mxu0
        %vm285 = vcmask 130048
        %v287 = vsel %vm285, %v192, 0
        %v290 = vsel %vm285, %v193, 0
        %292 = vmatprep.subr.mxu0 0.0
        %293 = vmatpush1.msra.mxu0 %v194
        %294 = vmatprep.subr.mxu0 0.0
        %295 = vmatpush1.msra.mxu0 %v195
        %296 = vmatprep.subr.mxu0 0.0
        %297 = vmatpush1.msra.mxu0 0.0
        %298 = vmatprep.subr.mxu0 0.0
        %299 = vmatpush1.msra.mxu0 0.0
        %300 = vmatprep.subr.mxu0 0.0
        %301 = vmatpush1.msra.mxu0 0.0
        %302 = vmatprep.subr.mxu0 0.0
        %303 = vmatpush1.msra.mxu0 0.0
        %304 = vmatprep.subr.mxu0 0.0
        %305 = vmatpush1.msra.mxu0 0.0
        %306 = vmatprep.subr.mxu0 0.0
        %307 = vmatpush1.msra.mxu0 0.0
        %308 = vmatprep.subr.mxu0 0.0
        %309 = vmatpush1.msra.mxu0 0.0
        %310 = vmatprep.subr.mxu0 0.0
        %311 = vmatpush1.msra.mxu0 0.0
        %312 = vmatprep.subr.mxu0 0.0
        %313 = vmatpush1.msra.mxu0 0.0
        %314 = vmatprep.subr.mxu0 0.0
        %315 = vmatpush1.msra.mxu0 0.0
        %316 = vmatprep.subr.mxu0 0.0
        %317 = vmatpush1.msra.mxu0 0.0
        %318 = vmatprep.subr.mxu0 0.0
        %319 = vmatpush1.msra.mxu0 0.0
        %320 = vmatprep.subr.mxu0 0.0
        %321 = vmatpush1.msra.mxu0 0.0
        %322 = vmatprep.subr.mxu0 0.0
        %323 = vmatpush1.msra.mxu0 0.0
        %324 = vmatprep.subr.mxu0 0.0
        %325 = vmatpush1.msra.mxu0 0.0
        %326 = vmatprep.subr.mxu0 0.0
        %327 = vmatpush1.msra.mxu0 0.0
        %328 = vmatprep.subr.mxu0 0.0
        %329 = vmatpush1.msra.mxu0 0.0
        %330 = vmatprep.subr.mxu0 0.0
        %331 = vmatpush1.msra.mxu0 0.0
        %332 = vmatprep.subr.mxu0 0.0
        %333 = vmatpush1.msra.mxu0 0.0
        %334 = vmatprep.subr.mxu0 0.0
        %335 = vmatpush1.msra.mxu0 0.0
        %336 = vmatprep.subr.mxu0 0.0
        %337 = vmatpush1.msra.mxu0 0.0
        %338 = vmatprep.subr.mxu0 0.0
        %339 = vmatpush1.msra.mxu0 0.0
        %340 = vmatprep.subr.mxu0 0.0
        %341 = vmatpush1.msra.mxu0 0.0
        %342 = vmatprep.subr.mxu0 0.0
        %343 = vmatpush1.msra.mxu0 0.0
        %344 = vmatprep.subr.mxu0 0.0
        %345 = vmatpush1.msra.mxu0 0.0
        %346 = vmatprep.subr.mxu0 0.0
        %347 = vmatpush1.msra.mxu0 0.0
        %348 = vmatprep.subr.mxu0 0.0
        %349 = vmatpush1.msra.mxu0 0.0
        %350 = vmatprep.subr.mxu0 0.0
        %351 = vmatpush1.msra.mxu0 0.0
        %352 = vmatprep.subr.mxu0 0.0
        %353 = vmatpush1.msra.mxu0 0.0
        %354 = vmatprep.subr.mxu0 0.0
        %355 = vmatpush1.msra.mxu0 0.0
        %356 = vmatprep.mubr.f32.mxu0 0.0
        %357 = vmatmul.mubr.f32.gmra.mrb[0].mxu0 %v287
        %v358 = vpop.f32.mrb[0].mxu0
        %v359 = vadd.f32 %v277, %v358
        %v360 = vpop.f32.mrb[0].mxu0
        %361 = vmatprep.mubr.f32.mxu0 0.0
        %362 = vmatmul.mubr.f32.gmra.mrb[0].mxu0 %v290
        %v363 = vpop.f32.mrb[0].mxu0
        %v364 = vadd.f32 %v282, %v363
        %v365 = vpop.f32.mrb[0].mxu0
        %366 = vdwg.mxu0
        %v367 = vld [vmem:[%s2 + $0x40] sm:$0x1]
        %v368 = vlaneseq
        %v369 = vshrl.u32 %v368, 7
        %v370 = vsub.s32 0, %v369
        %v371 = vrot.slane %v367, %v370
        %v372 = vadd.f32 %v359, %v371
        %v373 = vadd.f32 %v364, %v371
        %v374 = vmax.f32 %v372, 0.0
        %v375 = vmax.f32 %v373, 0.0
        %v376 = vld [vmem:[%s2 + $0x18] sm:$0xff]
        %v377 = vld [vmem:[%s2 + $0x20] sm:$0xff]
        %v378 = vld [vmem:[%s2 + $0x28] sm:$0xff]
        %v379 = vld [vmem:[%s2 + $0x30] sm:$0xff]
        %v380 = vld [vmem:[%s2 + $0x41] sm:$0x1]
        %v381 = vlaneseq
        %v382 = vshrl.u32 %v381, 7
        %v383 = vsub.s32 0, %v382
        %v384 = vrot.slane %v380, %v383
        %vm385 = vcmask 261120
        %v387 = vsel %vm385, %v374, 0
        %v390 = vsel %vm385, %v375, 0
        %392 = vmatprep.subr.mxu0 0.0
        %393 = vmatpush1.msra.mxu0 %v376
        %394 = vmatprep.subr.mxu0 0.0
        %395 = vmatpush1.msra.mxu0 %v377
        %396 = vmatprep.subr.mxu0 0.0
        %397 = vmatpush1.msra.mxu0 %v378
        %398 = vmatprep.subr.mxu0 0.0
        %399 = vmatpush1.msra.mxu0 %v379
        %400 = vmatprep.subr.mxu0 0.0
        %401 = vmatpush1.msra.mxu0 0.0
        %402 = vmatprep.subr.mxu0 0.0
        %403 = vmatpush1.msra.mxu0 0.0
        %404 = vmatprep.subr.mxu0 0.0
        %405 = vmatpush1.msra.mxu0 0.0
        %406 = vmatprep.subr.mxu0 0.0
        %407 = vmatpush1.msra.mxu0 0.0
        %408 = vmatprep.subr.mxu0 0.0
        %409 = vmatpush1.msra.mxu0 0.0
        %410 = vmatprep.subr.mxu0 0.0
        %411 = vmatpush1.msra.mxu0 0.0
        %412 = vmatprep.subr.mxu0 0.0
        %413 = vmatpush1.msra.mxu0 0.0
        %414 = vmatprep.subr.mxu0 0.0
        %415 = vmatpush1.msra.mxu0 0.0
        %416 = vmatprep.subr.mxu0 0.0
        %417 = vmatpush1.msra.mxu0 0.0
        %418 = vmatprep.subr.mxu0 0.0
        %419 = vmatpush1.msra.mxu0 0.0
        %420 = vmatprep.subr.mxu0 0.0
        %421 = vmatpush1.msra.mxu0 0.0
        %422 = vmatprep.subr.mxu0 0.0
        %423 = vmatpush1.msra.mxu0 0.0
        %424 = vmatprep.subr.mxu0 0.0
        %425 = vmatpush1.msra.mxu0 0.0
        %426 = vmatprep.subr.mxu0 0.0
        %427 = vmatpush1.msra.mxu0 0.0
        %428 = vmatprep.subr.mxu0 0.0
        %429 = vmatpush1.msra.mxu0 0.0
        %430 = vmatprep.subr.mxu0 0.0
        %431 = vmatpush1.msra.mxu0 0.0
        %432 = vmatprep.subr.mxu0 0.0
        %433 = vmatpush1.msra.mxu0 0.0
        %434 = vmatprep.subr.mxu0 0.0
        %435 = vmatpush1.msra.mxu0 0.0
        %436 = vmatprep.subr.mxu0 0.0
        %437 = vmatpush1.msra.mxu0 0.0
        %438 = vmatprep.subr.mxu0 0.0
        %439 = vmatpush1.msra.mxu0 0.0
        %440 = vmatprep.subr.mxu0 0.0
        %441 = vmatpush1.msra.mxu0 0.0
        %442 = vmatprep.subr.mxu0 0.0
        %443 = vmatpush1.msra.mxu0 0.0
        %444 = vmatprep.subr.mxu0 0.0
        %445 = vmatpush1.msra.mxu0 0.0
        %446 = vmatprep.subr.mxu0 0.0
        %447 = vmatpush1.msra.mxu0 0.0
        %448 = vmatprep.subr.mxu0 0.0
        %449 = vmatpush1.msra.mxu0 0.0
        %450 = vmatprep.subr.mxu0 0.0
        %451 = vmatpush1.msra.mxu0 0.0
        %452 = vmatprep.subr.mxu0 0.0
        %453 = vmatpush1.msra.mxu0 0.0
        %454 = vmatprep.subr.mxu0 0.0
        %455 = vmatpush1.msra.mxu0 0.0
        %456 = vmatprep.mubr.f32.mxu0 0.0
        %457 = vmatmul.mubr.f32.gmra.mrb[0].mxu0 %v387
        %v458 = vpop.f32.mrb[0].mxu0
        %v459 = vadd.f32 %v384, %v458
        %v460 = vpop.f32.mrb[0].mxu0
        %461 = vmatprep.mubr.f32.mxu0 0.0
        %462 = vmatmul.mubr.f32.gmra.mrb[0].mxu0 %v390
        %v463 = vpop.f32.mrb[0].mxu0
        %v464 = vadd.f32 %v384, %v463
        %v465 = vpop.f32.mrb[0].mxu0
        %466 = vdwg.mxu0
        %v467 = vmax.f32 %v459, 0.0
        %v468 = vmax.f32 %v464, 0.0
        %v469 = vld [vmem:[%s2 + $0x38] sm:$0x1]
        %v470 = vld [vmem:[%s2 + $0x48] sm:$0x1]
        %472 = vset.pattern.permute.xlu0 0
        %473 = vperm.xlu0 %472, %v470
        %v474 = vpop.permute.xlu0 %473
        %v477 = vsel %vm385, %v469, 0
        %v480 = vsel %vm385, %v467, 0
        %v483 = vsel %vm385, %v468, 0
        %485 = vmatprep.subr.mxu0 0.0
        %486 = vmatpush1.xpose.msra.mxu0 %v480
        %487 = vmatprep.subr.mxu0 0.0
        %488 = vmatpush1.xpose.msra.mxu0 %v483
        %489 = vmatprep.subr.mxu0 0.0
        %490 = vmatpush1.xpose.msra.mxu0 0.0
        %491 = vmatprep.subr.mxu0 0.0
        %492 = vmatpush1.xpose.msra.mxu0 0.0
        %493 = vmatprep.subr.mxu0 0.0
        %494 = vmatpush1.xpose.msra.mxu0 0.0
        %495 = vmatprep.subr.mxu0 0.0
        %496 = vmatpush1.xpose.msra.mxu0 0.0
        %497 = vmatprep.subr.mxu0 0.0
        %498 = vmatpush1.xpose.msra.mxu0 0.0
        %499 = vmatprep.subr.mxu0 0.0
        %500 = vmatpush1.xpose.msra.mxu0 0.0
        %501 = vmatprep.subr.mxu0 0.0
        %502 = vmatpush1.xpose.msra.mxu0 0.0
        %503 = vmatprep.subr.mxu0 0.0
        %504 = vmatpush1.xpose.msra.mxu0 0.0
        %505 = vmatprep.subr.mxu0 0.0
        %506 = vmatpush1.xpose.msra.mxu0 0.0
        %507 = vmatprep.subr.mxu0 0.0
        %508 = vmatpush1.xpose.msra.mxu0 0.0
        %509 = vmatprep.subr.mxu0 0.0
        %510 = vmatpush1.xpose.msra.mxu0 0.0
        %511 = vmatprep.subr.mxu0 0.0
        %512 = vmatpush1.xpose.msra.mxu0 0.0
        %513 = vmatprep.subr.mxu0 0.0
        %514 = vmatpush1.xpose.msra.mxu0 0.0
        %515 = vmatprep.subr.mxu0 0.0
        %516 = vmatpush1.xpose.msra.mxu0 0.0
        %517 = vmatprep.subr.mxu0 0.0
        %518 = vmatpush1.xpose.msra.mxu0 0.0
        %519 = vmatprep.subr.mxu0 0.0
        %520 = vmatpush1.xpose.msra.mxu0 0.0
        %521 = vmatprep.subr.mxu0 0.0
        %522 = vmatpush1.xpose.msra.mxu0 0.0
        %523 = vmatprep.subr.mxu0 0.0
        %524 = vmatpush1.xpose.msra.mxu0 0.0
        %525 = vmatprep.subr.mxu0 0.0
        %526 = vmatpush1.xpose.msra.mxu0 0.0
        %527 = vmatprep.subr.mxu0 0.0
        %528 = vmatpush1.xpose.msra.mxu0 0.0
        %529 = vmatprep.subr.mxu0 0.0
        %530 = vmatpush1.xpose.msra.mxu0 0.0
        %531 = vmatprep.subr.mxu0 0.0
        %532 = vmatpush1.xpose.msra.mxu0 0.0
        %533 = vmatprep.subr.mxu0 0.0
        %534 = vmatpush1.xpose.msra.mxu0 0.0
        %535 = vmatprep.subr.mxu0 0.0
        %536 = vmatpush1.xpose.msra.mxu0 0.0
        %537 = vmatprep.subr.mxu0 0.0
        %538 = vmatpush1.xpose.msra.mxu0 0.0
        %539 = vmatprep.subr.mxu0 0.0
        %540 = vmatpush1.xpose.msra.mxu0 0.0
        %541 = vmatprep.subr.mxu0 0.0
        %542 = vmatpush1.xpose.msra.mxu0 0.0
        %543 = vmatprep.subr.mxu0 0.0
        %544 = vmatpush1.xpose.msra.mxu0 0.0
        %545 = vmatprep.subr.mxu0 0.0
        %546 = vmatpush1.xpose.msra.mxu0 0.0
        %547 = vmatprep.subr.mxu0 0.0
        %548 = vmatpush1.xpose.msra.mxu0 0.0
        %549 = vmatprep.mubr.f32.mxu0 0.0
        %550 = vmatmul.mubr.f32.gmra.mrb[0].mxu0 %v477
        %v551 = vpop.f32.mrb[0].mxu0
        %v552 = vadd.f32 %v474, %v551
        %v553 = vpop.f32.mrb[0].mxu0
        %554 = vdwg.mxu0
        %vm555 = vcmask 122880
        %556 = vst.msk [vmem:[%s179] sm:$0x1] %vm555, %v552
        %s557 = sand.u32 %s98, 1
        %s558 = scalar_lea.sflag [#allocation3], %s557
        %s559 = sand.u32 %s98, 1
        %s560 = scalar_lea.vmem [#allocation2], %s559
        // Predicated region
        $region33: #{tpu_custom_call.1} parent=31 // pred_check
          %p561 = pneg %p108
        $region34: #{tpu_custom_call.1} parent=31 // pred_check_branch
          %563 = sbr.rel (%p561) target = $region36
        $region35: #{tpu_custom_call.1} parent=31 // pred_region
          %s565 = ssub.s32 16, 16
          %566 = vsyncadd %s558, %s565
          %s567 = smul.addr %s17, 16
          %s568 = scalar_lea.hbm %s3, %s567
          %s570 = sshll.u32 %s560, 4
          %s571 = int_to_ptr.vmem [resolvable:$true] %s570
          %573 = dma.vmem_to_hbm [thread:$0]  %s571, 16, %s568, %s558
        $region36: #{tpu_custom_call.1} parent=31 // pred_fallthru
          _
      $region32: #{tpu_custom_call.1} parent=5 // pred_fallthru
        _
      %p574 = scmp.le.s32.totalorder 2, %s12
      // Predicated region
      $region37: #{tpu_custom_call.1} parent=5 // pred_check
        %p575 = pneg %p574
      $region38: #{tpu_custom_call.1} parent=5 // pred_check_branch
        %577 = sbr.rel (%p575) target = $region40
      $region39: #{tpu_custom_call.1} parent=5 // pred_region
        %s578 = ssub.s32 %s12, 2
        // Predicated region
        $region41: #{tpu_custom_call.1} parent=39 // pred_check
          %p579 = pneg %p114
        $region42: #{tpu_custom_call.1} parent=39 // pred_check_branch
          %581 = sbr.rel (%p579) target = $region44
        $region43: #{tpu_custom_call.1} parent=39 // pred_region
          %s582 = sand.u32 %s99, 1
          %s583 = scalar_lea.sflag [#allocation3], %s582
          %s584 = sand.u32 %s99, 1
          %s585 = scalar_lea.vmem [#allocation2], %s584
          %586 = dma.done %s583, 16
        $region44: #{tpu_custom_call.1} parent=39 // pred_fallthru
          _
      $region40: #{tpu_custom_call.1} parent=5 // pred_fallthru
        _
    $region6: #{tpu_custom_call.1} parent=1 // loop_footer
      %s16 = sadd.s32 1, %s12
    $region7: #{tpu_custom_call.1} parent=1 // loop_footer_branch
      %11 = sbr.rel target = $region3
    $region8: #{tpu_custom_call.1} parent=1 // loop_exit
      _
    %587 = vsyncpa [#allocation3], 1
    %s588 = scalar_lea.sflag [#allocation3], 1
    %589 = vsyncpa %s588, 1

</llo_original>
